<compile_context>
chip_gen: v7x
topology: tpu7x:2x2x1
jax: 0.10.0
libtpu: 0.0.40
codegen_flags: <defaults>
</compile_context>

<pallas_src>
import functools

import jax
import jax.numpy as jnp
from jax import lax
from jax.experimental import pallas as pl
from jax.experimental.pallas import tpu as pltpu


def encoder_fusion_kernel(x_ref, w_ref, b_ref, out_ref, acc_ref, *, tk):
    # grid = (N tiles, K tiles); K (reduction) is the innermost axis.
    k = pl.program_id(1)

    @pl.when(k == 0)
    def _():
        acc_ref[...] = jnp.zeros_like(acc_ref)

    # Activations are fully VMEM-resident ([B, Fp]); slice the current K window here
    # instead of re-streaming them per grid step.
    off = pl.multiple_of(k * tk, 128)
    x_blk = x_ref[:, pl.ds(off, tk)]

    # w: [tn, tk] tile of the PyTorch-layout [H, F] weight; contract dim 1 of both
    # operands -> [B, tn], accumulated in f32 on the MXU.
    acc_ref[...] += lax.dot_general(
        x_blk, w_ref[...],
        dimension_numbers=(((1,), (1,)), ((), ())),
        preferred_element_type=jnp.float32)

    @pl.when(k == pl.num_programs(1) - 1)
    def _():
        out_ref[...] = jnp.tanh(acc_ref[...] + b_ref[...]).astype(out_ref.dtype)


def prepare_fusion_params(fusion_weight, fusion_bias):
    """One-time (model-load) conversion: bf16 cast + pad F to a multiple of 128.

    fusion_weight: [H, F] PyTorch nn.Linear layout, fusion_bias: [H].
    Returns (w_bf16 [H, Fp], b_f32 [1, H]).
    """
    H, F = fusion_weight.shape
    Fp = ((F + 127) // 128) * 128
    w = fusion_weight.astype(jnp.bfloat16)
    if Fp != F:
        w = jnp.pad(w, ((0, 0), (0, Fp - F)))  # zero pad -> dot product unchanged
    b = fusion_bias.astype(jnp.float32).reshape(1, H)
    return w, b


def _n_splits_for_device():
    """2-way output split only on dual-TensorCore chips (v7x); 1 otherwise."""
    try:
        kind = jax.devices()[0].device_kind.lower()
        if "v7" in kind or "7x" in kind:
            return 2
    except Exception:
        pass
    return 1


def _select_tiles(H, Fp, n_splits, weight_budget_bytes=14 * 1024 * 1024):
    """Pick (tn, tk): lane-dense N split only when n_splits==2, then the largest
    multiple-of-128 tk dividing Fp whose double-buffered bf16 weight tile fits the
    budget (keeps DMA steps at 2-4 for the real F=8960 while fitting every VMEM)."""
    tn = H
    if n_splits == 2 and H % 2 == 0 and (H // 2) % 128 == 0:
        tn = H // 2
    max_tk = max(128, weight_budget_bytes // (tn * 2 * 2))  # bf16, 2 buffers
    tk = 128
    t = 128
    while t <= min(Fp, max_tk):
        if Fp % t == 0:
            tk = t
        t += 128
    return tn, tk


def encoder_forward(audio, video, ques_embed, fusion_weight, fusion_bias):
    """audio: [B, A], video: [B, V], ques_embed: [B, H]
       fusion_weight: ideally the pre-prepared bf16 [H, Fp] from prepare_fusion_params
       (a raw f32 [H, F] PyTorch-layout weight is auto-converted as a slow fallback),
       fusion_bias: [1, H] f32 (or raw [H])."""
    B, A = audio.shape
    _, V = video.shape
    _, H = ques_embed.shape
    F = A + V + H
    out_dtype = audio.dtype

    w, b = fusion_weight, fusion_bias
    if w.dtype != jnp.bfloat16 or (w.shape[1] % 128) != 0 or b.ndim != 2:
        # Slow fallback path; callers should run prepare_fusion_params() once at load.
        w, b = prepare_fusion_params(w, jnp.reshape(b, (-1,)))
    Hc, Fp = w.shape
    assert Hc == H and Fp >= F

    # Concatenated activations are tiny (~B*F*2 bytes) vs the weight stream; concat
    # (+ pad to Fp) in the wrapper keeps the kernel a single clean matmul.
    x = jnp.concatenate([audio, video, ques_embed], axis=1).astype(jnp.bfloat16)
    if Fp != F:
        x = jnp.pad(x, ((0, 0), (0, Fp - F)))

    n_splits = _n_splits_for_device()
    tn, tk = _select_tiles(H, Fp, n_splits)
    grid = (H // tn, Fp // tk)

    # Explicit scoped-VMEM budget so enlarged tiles fit on every generation
    # (v5e default is only 16 MiB; v7x physical per-TC is 64 MiB).
    out_itemsize = jnp.dtype(out_dtype).itemsize
    vmem_bytes = (
        tn * tk * 2 * 2            # weight tile, bf16, double-buffered
        + B * Fp * 2 * 2           # resident activations (still allocated 2-deep)
        + B * tn * out_itemsize * 2  # output tile, double-buffered
        + tn * 4 * 2               # bias tile
        + B * tn * 4               # f32 accumulator scratch
    )
    vmem_limit = int(min(vmem_bytes + (16 << 20), 56 * 1024 * 1024))

    kernel = functools.partial(encoder_fusion_kernel, tk=tk)
    return pl.pallas_call(
        kernel,
        out_shape=jax.ShapeDtypeStruct((B, H), out_dtype),
        grid_spec=pltpu.PrefetchScalarGridSpec(
            num_scalar_prefetch=0,
            grid=grid,
            in_specs=[
                pl.BlockSpec((B, Fp), lambda n, k: (0, 0)),    # activations, resident
                pl.BlockSpec((tn, tk), lambda n, k: (n, k)),   # weight [H, Fp] tiles
                pl.BlockSpec((1, tn), lambda n, k: (0, n)),    # bias
            ],
            out_specs=pl.BlockSpec((B, tn), lambda n, k: (0, n)),
            scratch_shapes=[pltpu.VMEM((B, tn), jnp.float32)],
        ),
        compiler_params=pltpu.CompilerParams(
            dimension_semantics=("parallel", "arbitrary"),
            vmem_limit_bytes=vmem_limit),
    )(x, w, b)


if __name__ == "__main__":
    # Small, TPU-aligned stand-ins for the real sizes
    # (real: audio=4096, visual=4096, rnn_hidden=768 -> F=8960, tk=4480, 2 K steps).
    B = 8
    AUDIO_FEAT = 512
    VISUAL_FEAT = 512
    HIDDEN = 256
    FUSION = AUDIO_FEAT + VISUAL_FEAT + HIDDEN   # 1280

    key = jax.random.PRNGKey(0)
    k_aud, k_vis, k_q, k_w = jax.random.split(key, 4)

    audio = jax.random.normal(k_aud, (B, AUDIO_FEAT), dtype=jnp.float32)
    video = jax.random.normal(k_vis, (B, VISUAL_FEAT), dtype=jnp.float32)
    # TODO(synk): BERT / DynamicRNN question encoder not implemented; deterministic stand-in.
    ques_embed = jax.random.normal(k_q, (B, HIDDEN), dtype=jnp.float32)

    # fusion Linear: xavier_uniform_ weight [HIDDEN, FUSION], zero bias
    bound = (6.0 / (FUSION + HIDDEN)) ** 0.5
    fusion_weight = jax.random.uniform(
        k_w, (HIDDEN, FUSION), dtype=jnp.float32, minval=-bound, maxval=bound)
    fusion_bias = jnp.zeros((HIDDEN,), dtype=jnp.float32)

    # One-time weight preparation (bf16 cast + pad) -- the hot path never re-casts.
    w_prepped, b_prepped = prepare_fusion_params(fusion_weight, fusion_bias)
    w_prepped = jax.block_until_ready(w_prepped)

    out = encoder_forward(audio, video, ques_embed, w_prepped, b_prepped)
    out = jax.block_until_ready(out)
    assert out.shape == (B, HIDDEN)

    # Reference with matched bf16 operand rounding + f32 accumulation.
    fused = jnp.concatenate([audio, video, ques_embed], axis=1)
    fused_bf = fused.astype(jnp.bfloat16).astype(jnp.float32)
    w_bf = fusion_weight.astype(jnp.bfloat16).astype(jnp.float32)
    ref = jnp.tanh(fused_bf @ w_bf.T + fusion_bias)
    assert jnp.allclose(out, ref, atol=1e-2, rtol=1e-2), \
        float(jnp.max(jnp.abs(out - ref)))

    # Loose check against the exact f32 PyTorch-equivalent forward.
    ref_f32 = jnp.tanh(fused @ fusion_weight.T + fusion_bias)
    assert jnp.allclose(out, ref_f32, atol=5e-2), \
        float(jnp.max(jnp.abs(out - ref_f32)))

    print("KERNEL_OK")
</pallas_src>

<mosaic_0001>
module attributes {stable_mosaic.version = 11 : i64} {
  func.func @encoder_fusion_kernel(%arg0: i32, %arg1: i32, %arg2: memref<8x1280xbf16, #tpu.memory_space<vmem>>, %arg3: memref<256x1280xbf16, #tpu.memory_space<vmem>>, %arg4: memref<1x256xf32, #tpu.memory_space<vmem>>, %arg5: memref<8x256xf32, #tpu.memory_space<vmem>>, %arg6: memref<8x256xf32, #tpu.memory_space<vmem>>) attributes {dimension_semantics = [#tpu.dimension_semantics<parallel>, #tpu.dimension_semantics<arbitrary>], iteration_bounds = array<i64: 1, 1>, scalar_prefetch = 0 : i64, scratch_operands = 1 : i64, tpu.core_type = #tpu.core_type<tc>, window_params = [{pipeline_mode = #tpu.pipeline_mode<synchronous>, transform_indices = @transform_0, window_bounds = array<i64: 8, 1280>}, {transform_indices = @transform_1, window_bounds = array<i64: 256, 1280>}, {transform_indices = @transform_2, window_bounds = array<i64: 1, 256>}, {transform_indices = @transform_3, window_bounds = array<i64: 8, 256>}]} {
    %c0_i32 = arith.constant 0 : i32
    %0 = arith.cmpi eq, %arg1, %c0_i32 : i32
    %1 = arith.extui %0 : i1 to i32
    %c0_i32_0 = arith.constant 0 : i32
    %2 = arith.cmpi ne, %1, %c0_i32_0 : i32
    scf.if %2 {
      %cst_9 = arith.constant 0.000000e+00 : f32
      %15 = vector.broadcast %cst_9 : f32 to vector<8x256xf32>
      %c0_10 = arith.constant 0 : index
      %c0_11 = arith.constant 0 : index
      %16 = vector.load %arg6[%c0_10, %c0_11] : memref<8x256xf32, #tpu.memory_space<vmem>>, vector<8x256xf32>
      tpu.vector_store %arg6[%c0_10, %c0_11], %15 {strides = array<i32>} : memref<8x256xf32, #tpu.memory_space<vmem>>, vector<8x256xf32>,
    } else {
    }
    %c1280_i32 = arith.constant 1280 : i32
    %3 = arith.muli %arg1, %c1280_i32 : i32
    %4 = tpu.assume_multiple %3, 128 : i32
    %c0 = arith.constant 0 : index
    %5 = arith.index_cast %4 : i32 to index
    %6 = vector.load %arg2[%c0, %5] : memref<8x1280xbf16, #tpu.memory_space<vmem>>, vector<8x1280xbf16>
    %c0_1 = arith.constant 0 : index
    %c0_2 = arith.constant 0 : index
    %7 = vector.load %arg6[%c0_1, %c0_2] : memref<8x256xf32, #tpu.memory_space<vmem>>, vector<8x256xf32>
    %c0_3 = arith.constant 0 : index
    %c0_4 = arith.constant 0 : index
    %8 = vector.load %arg3[%c0_3, %c0_4] : memref<256x1280xbf16, #tpu.memory_space<vmem>>, vector<256x1280xbf16>
    %cst = arith.constant dense<0.000000e+00> : vector<8x256xf32>
    %9 = tpu.matmul %6, %8, %cst {dimension_numbers = #tpu.dot_dimension_numbers<[1], [1], [0], [0], [0, 0, 1, 0], [], []>} : vector<8x1280xbf16>, vector<256x1280xbf16>, vector<8x256xf32> -> vector<8x256xf32>
    %10 = arith.addf %7, %9 : vector<8x256xf32>
    %c0_5 = arith.constant 0 : index
    %c0_6 = arith.constant 0 : index
    %11 = vector.load %arg6[%c0_5, %c0_6] : memref<8x256xf32, #tpu.memory_space<vmem>>, vector<8x256xf32>
    tpu.vector_store %arg6[%c0_5, %c0_6], %10 {strides = array<i32>} : memref<8x256xf32, #tpu.memory_space<vmem>>, vector<8x256xf32>,
    %c0_i32_7 = arith.constant 0 : i32
    %12 = arith.cmpi eq, %arg1, %c0_i32_7 : i32
    %13 = arith.extui %12 : i1 to i32
    %c0_i32_8 = arith.constant 0 : i32
    %14 = arith.cmpi ne, %13, %c0_i32_8 : i32
    scf.if %14 {
      %c0_9 = arith.constant 0 : index
      %c0_10 = arith.constant 0 : index
      %15 = vector.load %arg6[%c0_9, %c0_10] : memref<8x256xf32, #tpu.memory_space<vmem>>, vector<8x256xf32>
      %c0_11 = arith.constant 0 : index
      %c0_12 = arith.constant 0 : index
      %16 = vector.load %arg4[%c0_11, %c0_12] : memref<1x256xf32, #tpu.memory_space<vmem>>, vector<1x256xf32>
      %17 = vector.broadcast %16 : vector<1x256xf32> to vector<8x256xf32>
      %18 = arith.addf %15, %17 : vector<8x256xf32>
      %19 = math.tanh %18 : vector<8x256xf32>
      %c0_13 = arith.constant 0 : index
      %c0_14 = arith.constant 0 : index
      %20 = vector.load %arg5[%c0_13, %c0_14] : memref<8x256xf32, #tpu.memory_space<vmem>>, vector<8x256xf32>
      tpu.vector_store %arg5[%c0_13, %c0_14], %19 {strides = array<i32>} : memref<8x256xf32, #tpu.memory_space<vmem>>, vector<8x256xf32>,
    } else {
    }
    return
  }
  func.func @transform_0(%arg0: i32, %arg1: i32) -> (i32, i32) {
    %c0_i32 = arith.constant 0 : i32
    %c0_i32_0 = arith.constant 0 : i32
    %c0_i32_1 = arith.constant 0 : i32
    return %c0_i32, %c0_i32_0 : i32, i32
  }
  func.func @transform_1(%arg0: i32, %arg1: i32) -> (i32, i32) {
    %c0_i32 = arith.constant 0 : i32
    return %arg0, %arg1 : i32, i32
  }
  func.func @transform_2(%arg0: i32, %arg1: i32) -> (i32, i32) {
    %c0_i32 = arith.constant 0 : i32
    %c0_i32_0 = arith.constant 0 : i32
    return %c0_i32, %arg0 : i32, i32
  }
  func.func @transform_3(%arg0: i32, %arg1: i32) -> (i32, i32) {
    %c0_i32 = arith.constant 0 : i32
    %c0_i32_0 = arith.constant 0 : i32
    return %c0_i32, %arg0 : i32, i32
  }
}

</mosaic_0001>

<llo_original>
// kernel: tpu_custom_call.1
$region0: #{tpu_custom_call.1}
  #allocation0 [shape = 'u32[]', space=smem, size = 0x4, offset = 0x4, fixed_abs, tag = 'smem constant byte address 0x4 - core index']
  #allocation1 [shape = 'u32[144,128]{1,0:T(1,128)}', space=vmem, size = 0x12000, scoped, tag = 'internal scratch']
  #allocation2 [shape = 'f32[8,256]{1,0:T(8,128)}', space=vmem, size = 0x2000, scoped, tag = 'scratch operand']
  %s0 = inlined_call_operand.hbm [shape: bf16[8,1280], index: 0, kind: input, shape index: {}]
  %s1 = inlined_call_operand.hbm [shape: bf16[256,1280], index: 1, kind: input, shape index: {}]
  %s2 = inlined_call_operand.vmem [shape: f32[1,256], index: 2, kind: input, shape index: {}]
  %s3 = inlined_call_operand.hbm [shape: f32[8,256], index: 3, kind: output, shape index: {}]
  %s4 = sld [smem:[#allocation0]]
  $region38: #{tpu_custom_call.1} parent=0
    _
  %s6 = ssub.s32 1, %s4
  %s7 = scalar_select 0, %s6, %s4
  $region1: #{tpu_custom_call.1} parent=0
    #allocation3 [shape = 'u8[20480]{0}', space=vmem, size = 0x5000, scoped, tag = 'input window, operand 0, single buffered']
    #allocation4 [shape = 's32[1]{0}', space=sflag, size = 0x4, scoped, tag = 'scoped memory for tpu_custom_call.1']
    #allocation5 [shape = 's32[1]{0}', space=sflag, size = 0x4, scoped, tag = 'scoped memory for tpu_custom_call.1']
    #allocation6 [shape = 'u8[655360]{0}', space=vmem, size = 0xa0000, scoped, tag = 'input window, operand 1, single buffered']
    #allocation7 [shape = 's32[1]{0}', space=sflag, size = 0x4, scoped, tag = 'scoped memory for tpu_custom_call.1']
    #allocation8 [shape = 'u8[8192]{0}', space=vmem, size = 0x2000, scoped, tag = 'output window, operand 0, single buffered']
    %8 = vsyncpa [#allocation4], 0
    %9 = vsyncpa [#allocation7], 0
    %10 = vsyncpa [#allocation5], 0
    // Predicated region
    $region2: #{tpu_custom_call.1} parent=1 // pred_check
      _
    $region3: #{tpu_custom_call.1} parent=1 // pred_check_branch
      %12 = sbr.rel (0) target = $region5
    $region4: #{tpu_custom_call.1} parent=1 // pred_region
      %s14 = ssub.s32 640, 640
      %15 = vsyncadd [#allocation4], %s14
      %s17 = sshll.u32 [#allocation3], 4
      %s18 = int_to_ptr.vmem [resolvable:$true] %s17
      %20 = dma.hbm_to_vmem [thread:$0]  %s0, 640, %s18, [#allocation4]
    $region5: #{tpu_custom_call.1} parent=1 // pred_fallthru
      _
    // Predicated region
    $region6: #{tpu_custom_call.1} parent=1 // pred_check
      _
    $region7: #{tpu_custom_call.1} parent=1 // pred_check_branch
      %22 = sbr.rel (0) target = $region9
    $region8: #{tpu_custom_call.1} parent=1 // pred_region
      %s24 = ssub.s32 20480, 20480
      %25 = vsyncadd [#allocation7], %s24
      %s26 = sshll.u32 [#allocation6], 4
      %s27 = int_to_ptr.vmem [resolvable:$true] %s26
      %32 = dma.hbm_to_vmem [thread:$0]  %s1, 20480, %s27, [#allocation7], 640, 640, 40
    $region9: #{tpu_custom_call.1} parent=1 // pred_fallthru
      _
    // Predicated region
    $region10: #{tpu_custom_call.1} parent=1 // pred_check
      _
    $region11: #{tpu_custom_call.1} parent=1 // pred_check_branch
      %34 = sbr.rel (0) target = $region13
    $region12: #{tpu_custom_call.1} parent=1 // pred_region
      _
    $region13: #{tpu_custom_call.1} parent=1 // pred_fallthru
      _
    // Predicated region
    $region14: #{tpu_custom_call.1} parent=1 // pred_check
      _
    $region15: #{tpu_custom_call.1} parent=1 // pred_check_branch
      %36 = sbr.rel (0) target = $region17
    $region16: #{tpu_custom_call.1} parent=1 // pred_region
      %37 = dma.done [#allocation4], 640
    $region17: #{tpu_custom_call.1} parent=1 // pred_fallthru
      _
    // Predicated region
    $region18: #{tpu_custom_call.1} parent=1 // pred_check
      _
    $region19: #{tpu_custom_call.1} parent=1 // pred_check_branch
      %39 = sbr.rel (0) target = $region21
    $region20: #{tpu_custom_call.1} parent=1 // pred_region
      %40 = dma.done [#allocation7], 20480
    $region21: #{tpu_custom_call.1} parent=1 // pred_fallthru
      _
    %p41 = scmp.eq.s32.totalorder 0, 0
    // Predicated region
    $region22: #{tpu_custom_call.1} parent=1 // pred_check
      %p42 = pneg %p41
    $region23: #{tpu_custom_call.1} parent=1 // pred_check_branch
      %44 = sbr.rel (%p42) target = $region25
    $region24: #{tpu_custom_call.1} parent=1 // pred_region
      %45 = vst [vmem:[#allocation2] sm:$0xff] 0.0
      %46 = vst [vmem:[#allocation2 + $0x8] sm:$0xff] 0.0
    $region25: #{tpu_custom_call.1} parent=1 // pred_fallthru
      _
    %s47 = smul.u32 0, 1280
    %s48 = sshra.s32 %s47, 7
    %s49 = sand.u32 %s47, 127
    %s50 = smul.addr %s48, 4
    %s51 = scalar_lea.vmem [#allocation3], %s50
    %v52 = vld [vmem:[%s51] sm:$0xff]
    %v53 = vld [vmem:[%s51 + $0x8] sm:$0xff]
    %v54 = vld [vmem:[%s51 + $0x10] sm:$0xff]
    %v55 = vld [vmem:[%s51 + $0x18] sm:$0xff]
    %v56 = vld [vmem:[%s51 + $0x20] sm:$0xff]
    %v57 = vld [vmem:[#allocation2] sm:$0xff]
    %v58 = vld [vmem:[#allocation2 + $0x8] sm:$0xff]
    %v59 = vld [vmem:[#allocation6] sm:$0xff]
    %v60 = vld [vmem:[#allocation6 + $0x8] sm:$0xff]
    %v61 = vld [vmem:[#allocation6 + $0x10] sm:$0xff]
    %v62 = vld [vmem:[#allocation6 + $0x18] sm:$0xff]
    %v63 = vld [vmem:[#allocation6 + $0x20] sm:$0xff]
    %v64 = vld [vmem:[#allocation6 + $0x28] sm:$0xff]
    %v65 = vld [vmem:[#allocation6 + $0x30] sm:$0xff]
    %v66 = vld [vmem:[#allocation6 + $0x38] sm:$0xff]
    %v67 = vld [vmem:[#allocation6 + $0x40] sm:$0xff]
    %v68 = vld [vmem:[#allocation6 + $0x48] sm:$0xff]
    %v69 = vld [vmem:[#allocation6 + $0x50] sm:$0xff]
    %v70 = vld [vmem:[#allocation6 + $0x58] sm:$0xff]
    %v71 = vld [vmem:[#allocation6 + $0x60] sm:$0xff]
    %v72 = vld [vmem:[#allocation6 + $0x68] sm:$0xff]
    %v73 = vld [vmem:[#allocation6 + $0x70] sm:$0xff]
    %v74 = vld [vmem:[#allocation6 + $0x78] sm:$0xff]
    %v75 = vld [vmem:[#allocation6 + $0x80] sm:$0xff]
    %v76 = vld [vmem:[#allocation6 + $0x88] sm:$0xff]
    %v77 = vld [vmem:[#allocation6 + $0x90] sm:$0xff]
    %v78 = vld [vmem:[#allocation6 + $0x98] sm:$0xff]
    %v79 = vld [vmem:[#allocation6 + $0xa0] sm:$0xff]
    %v80 = vld [vmem:[#allocation6 + $0xa8] sm:$0xff]
    %v81 = vld [vmem:[#allocation6 + $0xb0] sm:$0xff]
    %v82 = vld [vmem:[#allocation6 + $0xb8] sm:$0xff]
    %v83 = vld [vmem:[#allocation6 + $0xc0] sm:$0xff]
    %v84 = vld [vmem:[#allocation6 + $0xc8] sm:$0xff]
    %v85 = vld [vmem:[#allocation6 + $0xd0] sm:$0xff]
    %v86 = vld [vmem:[#allocation6 + $0xd8] sm:$0xff]
    %v87 = vld [vmem:[#allocation6 + $0xe0] sm:$0xff]
    %v88 = vld [vmem:[#allocation6 + $0xe8] sm:$0xff]
    %v89 = vld [vmem:[#allocation6 + $0xf0] sm:$0xff]
    %v90 = vld [vmem:[#allocation6 + $0xf8] sm:$0xff]
    %v91 = vld [vmem:[#allocation6 + $0x100] sm:$0xff]
    %v92 = vld [vmem:[#allocation6 + $0x108] sm:$0xff]
    %v93 = vld [vmem:[#allocation6 + $0x110] sm:$0xff]
    %v94 = vld [vmem:[#allocation6 + $0x118] sm:$0xff]
    %v95 = vld [vmem:[#allocation6 + $0x120] sm:$0xff]
    %v96 = vld [vmem:[#allocation6 + $0x128] sm:$0xff]
    %v97 = vld [vmem:[#allocation6 + $0x130] sm:$0xff]
    %v98 = vld [vmem:[#allocation6 + $0x138] sm:$0xff]
    %v99 = vld [vmem:[#allocation6 + $0x140] sm:$0xff]
    %v100 = vld [vmem:[#allocation6 + $0x148] sm:$0xff]
    %v101 = vld [vmem:[#allocation6 + $0x150] sm:$0xff]
    %v102 = vld [vmem:[#allocation6 + $0x158] sm:$0xff]
    %v103 = vld [vmem:[#allocation6 + $0x160] sm:$0xff]
    %v104 = vld [vmem:[#allocation6 + $0x168] sm:$0xff]
    %v105 = vld [vmem:[#allocation6 + $0x170] sm:$0xff]
    %v106 = vld [vmem:[#allocation6 + $0x178] sm:$0xff]
    %v107 = vld [vmem:[#allocation6 + $0x180] sm:$0xff]
    %v108 = vld [vmem:[#allocation6 + $0x188] sm:$0xff]
    %v109 = vld [vmem:[#allocation6 + $0x190] sm:$0xff]
    %v110 = vld [vmem:[#allocation6 + $0x198] sm:$0xff]
    %v111 = vld [vmem:[#allocation6 + $0x1a0] sm:$0xff]
    %v112 = vld [vmem:[#allocation6 + $0x1a8] sm:$0xff]
    %v113 = vld [vmem:[#allocation6 + $0x1b0] sm:$0xff]
    %v114 = vld [vmem:[#allocation6 + $0x1b8] sm:$0xff]
    %v115 = vld [vmem:[#allocation6 + $0x1c0] sm:$0xff]
    %v116 = vld [vmem:[#allocation6 + $0x1c8] sm:$0xff]
    %v117 = vld [vmem:[#allocation6 + $0x1d0] sm:$0xff]
    %v118 = vld [vmem:[#allocation6 + $0x1d8] sm:$0xff]
    %v119 = vld [vmem:[#allocation6 + $0x1e0] sm:$0xff]
    %v120 = vld [vmem:[#allocation6 + $0x1e8] sm:$0xff]
    %v121 = vld [vmem:[#allocation6 + $0x1f0] sm:$0xff]
    %v122 = vld [vmem:[#allocation6 + $0x1f8] sm:$0xff]
    %v123 = vld [vmem:[#allocation6 + $0x200] sm:$0xff]
    %v124 = vld [vmem:[#allocation6 + $0x208] sm:$0xff]
    %v125 = vld [vmem:[#allocation6 + $0x210] sm:$0xff]
    %v126 = vld [vmem:[#allocation6 + $0x218] sm:$0xff]
    %v127 = vld [vmem:[#allocation6 + $0x220] sm:$0xff]
    %v128 = vld [vmem:[#allocation6 + $0x228] sm:$0xff]
    %v129 = vld [vmem:[#allocation6 + $0x230] sm:$0xff]
    %v130 = vld [vmem:[#allocation6 + $0x238] sm:$0xff]
    %v131 = vld [vmem:[#allocation6 + $0x240] sm:$0xff]
    %v132 = vld [vmem:[#allocation6 + $0x248] sm:$0xff]
    %v133 = vld [vmem:[#allocation6 + $0x250] sm:$0xff]
    %v134 = vld [vmem:[#allocation6 + $0x258] sm:$0xff]
    %v135 = vld [vmem:[#allocation6 + $0x260] sm:$0xff]
    %v136 = vld [vmem:[#allocation6 + $0x268] sm:$0xff]
    %v137 = vld [vmem:[#allocation6 + $0x270] sm:$0xff]
    %v138 = vld [vmem:[#allocation6 + $0x278] sm:$0xff]
    %v139 = vld [vmem:[#allocation6 + $0x280] sm:$0xff]
    %v140 = vld [vmem:[#allocation6 + $0x288] sm:$0xff]
    %v141 = vld [vmem:[#allocation6 + $0x290] sm:$0xff]
    %v142 = vld [vmem:[#allocation6 + $0x298] sm:$0xff]
    %v143 = vld [vmem:[#allocation6 + $0x2a0] sm:$0xff]
    %v144 = vld [vmem:[#allocation6 + $0x2a8] sm:$0xff]
    %v145 = vld [vmem:[#allocation6 + $0x2b0] sm:$0xff]
    %v146 = vld [vmem:[#allocation6 + $0x2b8] sm:$0xff]
    %v147 = vld [vmem:[#allocation6 + $0x2c0] sm:$0xff]
    %v148 = vld [vmem:[#allocation6 + $0x2c8] sm:$0xff]
    %v149 = vld [vmem:[#allocation6 + $0x2d0] sm:$0xff]
    %v150 = vld [vmem:[#allocation6 + $0x2d8] sm:$0xff]
    %v151 = vld [vmem:[#allocation6 + $0x2e0] sm:$0xff]
    %v152 = vld [vmem:[#allocation6 + $0x2e8] sm:$0xff]
    %v153 = vld [vmem:[#allocation6 + $0x2f0] sm:$0xff]
    %v154 = vld [vmem:[#allocation6 + $0x2f8] sm:$0xff]
    %v155 = vld [vmem:[#allocation6 + $0x300] sm:$0xff]
    %v156 = vld [vmem:[#allocation6 + $0x308] sm:$0xff]
    %v157 = vld [vmem:[#allocation6 + $0x310] sm:$0xff]
    %v158 = vld [vmem:[#allocation6 + $0x318] sm:$0xff]
    %v159 = vld [vmem:[#allocation6 + $0x320] sm:$0xff]
    %v160 = vld [vmem:[#allocation6 + $0x328] sm:$0xff]
    %v161 = vld [vmem:[#allocation6 + $0x330] sm:$0xff]
    %v162 = vld [vmem:[#allocation6 + $0x338] sm:$0xff]
    %v163 = vld [vmem:[#allocation6 + $0x340] sm:$0xff]
    %v164 = vld [vmem:[#allocation6 + $0x348] sm:$0xff]
    %v165 = vld [vmem:[#allocation6 + $0x350] sm:$0xff]
    %v166 = vld [vmem:[#allocation6 + $0x358] sm:$0xff]
    %v167 = vld [vmem:[#allocation6 + $0x360] sm:$0xff]
    %v168 = vld [vmem:[#allocation6 + $0x368] sm:$0xff]
    %v169 = vld [vmem:[#allocation6 + $0x370] sm:$0xff]
    %v170 = vld [vmem:[#allocation6 + $0x378] sm:$0xff]
    %v171 = vld [vmem:[#allocation6 + $0x380] sm:$0xff]
    %v172 = vld [vmem:[#allocation6 + $0x388] sm:$0xff]
    %v173 = vld [vmem:[#allocation6 + $0x390] sm:$0xff]
    %v174 = vld [vmem:[#allocation6 + $0x398] sm:$0xff]
    %v175 = vld [vmem:[#allocation6 + $0x3a0] sm:$0xff]
    %v176 = vld [vmem:[#allocation6 + $0x3a8] sm:$0xff]
    %v177 = vld [vmem:[#allocation6 + $0x3b0] sm:$0xff]
    %v178 = vld [vmem:[#allocation6 + $0x3b8] sm:$0xff]
    %v179 = vld [vmem:[#allocation6 + $0x3c0] sm:$0xff]
    %v180 = vld [vmem:[#allocation6 + $0x3c8] sm:$0xff]
    %v181 = vld [vmem:[#allocation6 + $0x3d0] sm:$0xff]
    %v182 = vld [vmem:[#allocation6 + $0x3d8] sm:$0xff]
    %v183 = vld [vmem:[#allocation6 + $0x3e0] sm:$0xff]
    %v184 = vld [vmem:[#allocation6 + $0x3e8] sm:$0xff]
    %v185 = vld [vmem:[#allocation6 + $0x3f0] sm:$0xff]
    %v186 = vld [vmem:[#allocation6 + $0x3f8] sm:$0xff]
    %v187 = vld [vmem:[#allocation6 + $0x400] sm:$0xff]
    %v188 = vld [vmem:[#allocation6 + $0x408] sm:$0xff]
    %v189 = vld [vmem:[#allocation6 + $0x410] sm:$0xff]
    %v190 = vld [vmem:[#allocation6 + $0x418] sm:$0xff]
    %v191 = vld [vmem:[#allocation6 + $0x420] sm:$0xff]
    %v192 = vld [vmem:[#allocation6 + $0x428] sm:$0xff]
    %v193 = vld [vmem:[#allocation6 + $0x430] sm:$0xff]
    %v194 = vld [vmem:[#allocation6 + $0x438] sm:$0xff]
    %v195 = vld [vmem:[#allocation6 + $0x440] sm:$0xff]
    %v196 = vld [vmem:[#allocation6 + $0x448] sm:$0xff]
    %v197 = vld [vmem:[#allocation6 + $0x450] sm:$0xff]
    %v198 = vld [vmem:[#allocation6 + $0x458] sm:$0xff]
    %v199 = vld [vmem:[#allocation6 + $0x460] sm:$0xff]
    %v200 = vld [vmem:[#allocation6 + $0x468] sm:$0xff]
    %v201 = vld [vmem:[#allocation6 + $0x470] sm:$0xff]
    %v202 = vld [vmem:[#allocation6 + $0x478] sm:$0xff]
    %v203 = vld [vmem:[#allocation6 + $0x480] sm:$0xff]
    %v204 = vld [vmem:[#allocation6 + $0x488] sm:$0xff]
    %v205 = vld [vmem:[#allocation6 + $0x490] sm:$0xff]
    %v206 = vld [vmem:[#allocation6 + $0x498] sm:$0xff]
    %v207 = vld [vmem:[#allocation6 + $0x4a0] sm:$0xff]
    %v208 = vld [vmem:[#allocation6 + $0x4a8] sm:$0xff]
    %v209 = vld [vmem:[#allocation6 + $0x4b0] sm:$0xff]
    %v210 = vld [vmem:[#allocation6 + $0x4b8] sm:$0xff]
    %v211 = vld [vmem:[#allocation6 + $0x4c0] sm:$0xff]
    %v212 = vld [vmem:[#allocation6 + $0x4c8] sm:$0xff]
    %v213 = vld [vmem:[#allocation6 + $0x4d0] sm:$0xff]
    %v214 = vld [vmem:[#allocation6 + $0x4d8] sm:$0xff]
    %v215 = vld [vmem:[#allocation6 + $0x4e0] sm:$0xff]
    %v216 = vld [vmem:[#allocation6 + $0x4e8] sm:$0xff]
    %v217 = vld [vmem:[#allocation6 + $0x4f0] sm:$0xff]
    %v218 = vld [vmem:[#allocation6 + $0x4f8] sm:$0xff]
    %v224 = vunpack.c.l.b16 %v52
    %v225 = vunpack.c.h.b16 %v52
    %v226 = vunpack.c.l.b16 %v53
    %v227 = vunpack.c.h.b16 %v53
    %v228 = vunpack.c.l.b16 %v54
    %v229 = vunpack.c.h.b16 %v54
    %v230 = vunpack.c.l.b16 %v55
    %v231 = vunpack.c.h.b16 %v55
    %v232 = vunpack.c.l.b16 %v56
    %v233 = vunpack.c.h.b16 %v56
    %v234 = vpack.c.b16 %v224, %v224
    %v235 = vpack.c.b16 %v225, %v225
    %v236 = vpack.c.b16 %v226, %v226
    %v237 = vpack.c.b16 %v227, %v227
    %v238 = vpack.c.b16 %v228, %v228
    %v239 = vpack.c.b16 %v229, %v229
    %v240 = vpack.c.b16 %v230, %v230
    %v241 = vpack.c.b16 %v231, %v231
    %v242 = vpack.c.b16 %v232, %v232
    %v243 = vpack.c.b16 %v233, %v233
    %v414 = vunpack.c.l.b16 %v59
    %v415 = vunpack.c.h.b16 %v59
    %v416 = vunpack.c.l.b16 %v60
    %v417 = vunpack.c.h.b16 %v60
    %v418 = vunpack.c.l.b16 %v61
    %v419 = vunpack.c.h.b16 %v61
    %v420 = vunpack.c.l.b16 %v62
    %v421 = vunpack.c.h.b16 %v62
    %v422 = vunpack.c.l.b16 %v63
    %v423 = vunpack.c.h.b16 %v63
    %v424 = vunpack.c.l.b16 %v64
    %v425 = vunpack.c.h.b16 %v64
    %v426 = vunpack.c.l.b16 %v65
    %v427 = vunpack.c.h.b16 %v65
    %v428 = vunpack.c.l.b16 %v66
    %v429 = vunpack.c.h.b16 %v66
    %v430 = vunpack.c.l.b16 %v67
    %v431 = vunpack.c.h.b16 %v67
    %v432 = vunpack.c.l.b16 %v68
    %v433 = vunpack.c.h.b16 %v68
    %v434 = vunpack.c.l.b16 %v69
    %v435 = vunpack.c.h.b16 %v69
    %v436 = vunpack.c.l.b16 %v70
    %v437 = vunpack.c.h.b16 %v70
    %v438 = vunpack.c.l.b16 %v71
    %v439 = vunpack.c.h.b16 %v71
    %v440 = vunpack.c.l.b16 %v72
    %v441 = vunpack.c.h.b16 %v72
    %v442 = vunpack.c.l.b16 %v73
    %v443 = vunpack.c.h.b16 %v73
    %v444 = vunpack.c.l.b16 %v74
    %v445 = vunpack.c.h.b16 %v74
    %v446 = vunpack.c.l.b16 %v75
    %v447 = vunpack.c.h.b16 %v75
    %v448 = vunpack.c.l.b16 %v76
    %v449 = vunpack.c.h.b16 %v76
    %v450 = vunpack.c.l.b16 %v77
    %v451 = vunpack.c.h.b16 %v77
    %v452 = vunpack.c.l.b16 %v78
    %v453 = vunpack.c.h.b16 %v78
    %v454 = vunpack.c.l.b16 %v79
    %v455 = vunpack.c.h.b16 %v79
    %v456 = vunpack.c.l.b16 %v80
    %v457 = vunpack.c.h.b16 %v80
    %v458 = vunpack.c.l.b16 %v81
    %v459 = vunpack.c.h.b16 %v81
    %v460 = vunpack.c.l.b16 %v82
    %v461 = vunpack.c.h.b16 %v82
    %v462 = vunpack.c.l.b16 %v83
    %v463 = vunpack.c.h.b16 %v83
    %v464 = vunpack.c.l.b16 %v84
    %v465 = vunpack.c.h.b16 %v84
    %v466 = vunpack.c.l.b16 %v85
    %v467 = vunpack.c.h.b16 %v85
    %v468 = vunpack.c.l.b16 %v86
    %v469 = vunpack.c.h.b16 %v86
    %v470 = vunpack.c.l.b16 %v87
    %v471 = vunpack.c.h.b16 %v87
    %v472 = vunpack.c.l.b16 %v88
    %v473 = vunpack.c.h.b16 %v88
    %v474 = vunpack.c.l.b16 %v89
    %v475 = vunpack.c.h.b16 %v89
    %v476 = vunpack.c.l.b16 %v90
    %v477 = vunpack.c.h.b16 %v90
    %v478 = vunpack.c.l.b16 %v91
    %v479 = vunpack.c.h.b16 %v91
    %v480 = vunpack.c.l.b16 %v92
    %v481 = vunpack.c.h.b16 %v92
    %v482 = vunpack.c.l.b16 %v93
    %v483 = vunpack.c.h.b16 %v93
    %v484 = vunpack.c.l.b16 %v94
    %v485 = vunpack.c.h.b16 %v94
    %v486 = vunpack.c.l.b16 %v95
    %v487 = vunpack.c.h.b16 %v95
    %v488 = vunpack.c.l.b16 %v96
    %v489 = vunpack.c.h.b16 %v96
    %v490 = vunpack.c.l.b16 %v97
    %v491 = vunpack.c.h.b16 %v97
    %v492 = vunpack.c.l.b16 %v98
    %v493 = vunpack.c.h.b16 %v98
    %v494 = vunpack.c.l.b16 %v99
    %v495 = vunpack.c.h.b16 %v99
    %v496 = vunpack.c.l.b16 %v100
    %v497 = vunpack.c.h.b16 %v100
    %v498 = vunpack.c.l.b16 %v101
    %v499 = vunpack.c.h.b16 %v101
    %v500 = vunpack.c.l.b16 %v102
    %v501 = vunpack.c.h.b16 %v102
    %v502 = vunpack.c.l.b16 %v103
    %v503 = vunpack.c.h.b16 %v103
    %v504 = vunpack.c.l.b16 %v104
    %v505 = vunpack.c.h.b16 %v104
    %v506 = vunpack.c.l.b16 %v105
    %v507 = vunpack.c.h.b16 %v105
    %v508 = vunpack.c.l.b16 %v106
    %v509 = vunpack.c.h.b16 %v106
    %v510 = vunpack.c.l.b16 %v107
    %v511 = vunpack.c.h.b16 %v107
    %v512 = vunpack.c.l.b16 %v108
    %v513 = vunpack.c.h.b16 %v108
    %v514 = vunpack.c.l.b16 %v109
    %v515 = vunpack.c.h.b16 %v109
    %v516 = vunpack.c.l.b16 %v110
    %v517 = vunpack.c.h.b16 %v110
    %v518 = vunpack.c.l.b16 %v111
    %v519 = vunpack.c.h.b16 %v111
    %v520 = vunpack.c.l.b16 %v112
    %v521 = vunpack.c.h.b16 %v112
    %v522 = vunpack.c.l.b16 %v113
    %v523 = vunpack.c.h.b16 %v113
    %v524 = vunpack.c.l.b16 %v114
    %v525 = vunpack.c.h.b16 %v114
    %v526 = vunpack.c.l.b16 %v115
    %v527 = vunpack.c.h.b16 %v115
    %v528 = vunpack.c.l.b16 %v116
    %v529 = vunpack.c.h.b16 %v116
    %v530 = vunpack.c.l.b16 %v117
    %v531 = vunpack.c.h.b16 %v117
    %v532 = vunpack.c.l.b16 %v118
    %v533 = vunpack.c.h.b16 %v118
    %v534 = vunpack.c.l.b16 %v119
    %v535 = vunpack.c.h.b16 %v119
    %v536 = vunpack.c.l.b16 %v120
    %v537 = vunpack.c.h.b16 %v120
    %v538 = vunpack.c.l.b16 %v121
    %v539 = vunpack.c.h.b16 %v121
    %v540 = vunpack.c.l.b16 %v122
    %v541 = vunpack.c.h.b16 %v122
    %v542 = vunpack.c.l.b16 %v123
    %v543 = vunpack.c.h.b16 %v123
    %v544 = vunpack.c.l.b16 %v124
    %v545 = vunpack.c.h.b16 %v124
    %v546 = vunpack.c.l.b16 %v125
    %v547 = vunpack.c.h.b16 %v125
    %v548 = vunpack.c.l.b16 %v126
    %v549 = vunpack.c.h.b16 %v126
    %v550 = vunpack.c.l.b16 %v127
    %v551 = vunpack.c.h.b16 %v127
    %v552 = vunpack.c.l.b16 %v128
    %v553 = vunpack.c.h.b16 %v128
    %v554 = vunpack.c.l.b16 %v129
    %v555 = vunpack.c.h.b16 %v129
    %v556 = vunpack.c.l.b16 %v130
    %v557 = vunpack.c.h.b16 %v130
    %v558 = vunpack.c.l.b16 %v131
    %v559 = vunpack.c.h.b16 %v131
    %v560 = vunpack.c.l.b16 %v132
    %v561 = vunpack.c.h.b16 %v132
    %v562 = vunpack.c.l.b16 %v133
    %v563 = vunpack.c.h.b16 %v133
    %v564 = vunpack.c.l.b16 %v134
    %v565 = vunpack.c.h.b16 %v134
    %v566 = vunpack.c.l.b16 %v135
    %v567 = vunpack.c.h.b16 %v135
    %v568 = vunpack.c.l.b16 %v136
    %v569 = vunpack.c.h.b16 %v136
    %v570 = vunpack.c.l.b16 %v137
    %v571 = vunpack.c.h.b16 %v137
    %v572 = vunpack.c.l.b16 %v138
    %v573 = vunpack.c.h.b16 %v138
    %v574 = vunpack.c.l.b16 %v139
    %v575 = vunpack.c.h.b16 %v139
    %v576 = vunpack.c.l.b16 %v140
    %v577 = vunpack.c.h.b16 %v140
    %v578 = vunpack.c.l.b16 %v141
    %v579 = vunpack.c.h.b16 %v141
    %v580 = vunpack.c.l.b16 %v142
    %v581 = vunpack.c.h.b16 %v142
    %v582 = vunpack.c.l.b16 %v143
    %v583 = vunpack.c.h.b16 %v143
    %v584 = vunpack.c.l.b16 %v144
    %v585 = vunpack.c.h.b16 %v144
    %v586 = vunpack.c.l.b16 %v145
    %v587 = vunpack.c.h.b16 %v145
    %v588 = vunpack.c.l.b16 %v146
    %v589 = vunpack.c.h.b16 %v146
    %v590 = vunpack.c.l.b16 %v147
    %v591 = vunpack.c.h.b16 %v147
    %v592 = vunpack.c.l.b16 %v148
    %v593 = vunpack.c.h.b16 %v148
    %v594 = vunpack.c.l.b16 %v149
    %v595 = vunpack.c.h.b16 %v149
    %v596 = vunpack.c.l.b16 %v150
    %v597 = vunpack.c.h.b16 %v150
    %v598 = vunpack.c.l.b16 %v151
    %v599 = vunpack.c.h.b16 %v151
    %v600 = vunpack.c.l.b16 %v152
    %v601 = vunpack.c.h.b16 %v152
    %v602 = vunpack.c.l.b16 %v153
    %v603 = vunpack.c.h.b16 %v153
    %v604 = vunpack.c.l.b16 %v154
    %v605 = vunpack.c.h.b16 %v154
    %v606 = vunpack.c.l.b16 %v155
    %v607 = vunpack.c.h.b16 %v155
    %v608 = vunpack.c.l.b16 %v156
    %v609 = vunpack.c.h.b16 %v156
    %v610 = vunpack.c.l.b16 %v157
    %v611 = vunpack.c.h.b16 %v157
    %v612 = vunpack.c.l.b16 %v158
    %v613 = vunpack.c.h.b16 %v158
    %v614 = vunpack.c.l.b16 %v159
    %v615 = vunpack.c.h.b16 %v159
    %v616 = vunpack.c.l.b16 %v160
    %v617 = vunpack.c.h.b16 %v160
    %v618 = vunpack.c.l.b16 %v161
    %v619 = vunpack.c.h.b16 %v161
    %v620 = vunpack.c.l.b16 %v162
    %v621 = vunpack.c.h.b16 %v162
    %v622 = vunpack.c.l.b16 %v163
    %v623 = vunpack.c.h.b16 %v163
    %v624 = vunpack.c.l.b16 %v164
    %v625 = vunpack.c.h.b16 %v164
    %v626 = vunpack.c.l.b16 %v165
    %v627 = vunpack.c.h.b16 %v165
    %v628 = vunpack.c.l.b16 %v166
    %v629 = vunpack.c.h.b16 %v166
    %v630 = vunpack.c.l.b16 %v167
    %v631 = vunpack.c.h.b16 %v167
    %v632 = vunpack.c.l.b16 %v168
    %v633 = vunpack.c.h.b16 %v168
    %v634 = vunpack.c.l.b16 %v169
    %v635 = vunpack.c.h.b16 %v169
    %v636 = vunpack.c.l.b16 %v170
    %v637 = vunpack.c.h.b16 %v170
    %v638 = vunpack.c.l.b16 %v171
    %v639 = vunpack.c.h.b16 %v171
    %v640 = vunpack.c.l.b16 %v172
    %v641 = vunpack.c.h.b16 %v172
    %v642 = vunpack.c.l.b16 %v173
    %v643 = vunpack.c.h.b16 %v173
    %v644 = vunpack.c.l.b16 %v174
    %v645 = vunpack.c.h.b16 %v174
    %v646 = vunpack.c.l.b16 %v175
    %v647 = vunpack.c.h.b16 %v175
    %v648 = vunpack.c.l.b16 %v176
    %v649 = vunpack.c.h.b16 %v176
    %v650 = vunpack.c.l.b16 %v177
    %v651 = vunpack.c.h.b16 %v177
    %v652 = vunpack.c.l.b16 %v178
    %v653 = vunpack.c.h.b16 %v178
    %v654 = vunpack.c.l.b16 %v179
    %v655 = vunpack.c.h.b16 %v179
    %v656 = vunpack.c.l.b16 %v180
    %v657 = vunpack.c.h.b16 %v180
    %v658 = vunpack.c.l.b16 %v181
    %v659 = vunpack.c.h.b16 %v181
    %v660 = vunpack.c.l.b16 %v182
    %v661 = vunpack.c.h.b16 %v182
    %v662 = vunpack.c.l.b16 %v183
    %v663 = vunpack.c.h.b16 %v183
    %v664 = vunpack.c.l.b16 %v184
    %v665 = vunpack.c.h.b16 %v184
    %v666 = vunpack.c.l.b16 %v185
    %v667 = vunpack.c.h.b16 %v185
    %v668 = vunpack.c.l.b16 %v186
    %v669 = vunpack.c.h.b16 %v186
    %v670 = vunpack.c.l.b16 %v187
    %v671 = vunpack.c.h.b16 %v187
    %v672 = vunpack.c.l.b16 %v188
    %v673 = vunpack.c.h.b16 %v188
    %v674 = vunpack.c.l.b16 %v189
    %v675 = vunpack.c.h.b16 %v189
    %v676 = vunpack.c.l.b16 %v190
    %v677 = vunpack.c.h.b16 %v190
    %v678 = vunpack.c.l.b16 %v191
    %v679 = vunpack.c.h.b16 %v191
    %v680 = vunpack.c.l.b16 %v192
    %v681 = vunpack.c.h.b16 %v192
    %v682 = vunpack.c.l.b16 %v193
    %v683 = vunpack.c.h.b16 %v193
    %v684 = vunpack.c.l.b16 %v194
    %v685 = vunpack.c.h.b16 %v194
    %v686 = vunpack.c.l.b16 %v195
    %v687 = vunpack.c.h.b16 %v195
    %v688 = vunpack.c.l.b16 %v196
    %v689 = vunpack.c.h.b16 %v196
    %v690 = vunpack.c.l.b16 %v197
    %v691 = vunpack.c.h.b16 %v197
    %v692 = vunpack.c.l.b16 %v198
    %v693 = vunpack.c.h.b16 %v198
    %v694 = vunpack.c.l.b16 %v199
    %v695 = vunpack.c.h.b16 %v199
    %v696 = vunpack.c.l.b16 %v200
    %v697 = vunpack.c.h.b16 %v200
    %v698 = vunpack.c.l.b16 %v201
    %v699 = vunpack.c.h.b16 %v201
    %v700 = vunpack.c.l.b16 %v202
    %v701 = vunpack.c.h.b16 %v202
    %v702 = vunpack.c.l.b16 %v203
    %v703 = vunpack.c.h.b16 %v203
    %v704 = vunpack.c.l.b16 %v204
    %v705 = vunpack.c.h.b16 %v204
    %v706 = vunpack.c.l.b16 %v205
    %v707 = vunpack.c.h.b16 %v205
    %v708 = vunpack.c.l.b16 %v206
    %v709 = vunpack.c.h.b16 %v206
    %v710 = vunpack.c.l.b16 %v207
    %v711 = vunpack.c.h.b16 %v207
    %v712 = vunpack.c.l.b16 %v208
    %v713 = vunpack.c.h.b16 %v208
    %v714 = vunpack.c.l.b16 %v209
    %v715 = vunpack.c.h.b16 %v209
    %v716 = vunpack.c.l.b16 %v210
    %v717 = vunpack.c.h.b16 %v210
    %v718 = vunpack.c.l.b16 %v211
    %v719 = vunpack.c.h.b16 %v211
    %v720 = vunpack.c.l.b16 %v212
    %v721 = vunpack.c.h.b16 %v212
    %v722 = vunpack.c.l.b16 %v213
    %v723 = vunpack.c.h.b16 %v213
    %v724 = vunpack.c.l.b16 %v214
    %v725 = vunpack.c.h.b16 %v214
    %v726 = vunpack.c.l.b16 %v215
    %v727 = vunpack.c.h.b16 %v215
    %v728 = vunpack.c.l.b16 %v216
    %v729 = vunpack.c.h.b16 %v216
    %v730 = vunpack.c.l.b16 %v217
    %v731 = vunpack.c.h.b16 %v217
    %v732 = vunpack.c.l.b16 %v218
    %v733 = vunpack.c.h.b16 %v218
    %v734 = vpack.c.b16 %v424, %v414
    %v735 = vpack.c.b16 %v425, %v415
    %v736 = vpack.c.b16 %v426, %v416
    %v737 = vpack.c.b16 %v427, %v417
    %v738 = vpack.c.b16 %v428, %v418
    %v739 = vpack.c.b16 %v429, %v419
    %v740 = vpack.c.b16 %v430, %v420
    %v741 = vpack.c.b16 %v431, %v421
    %v742 = vpack.c.b16 %v432, %v422
    %v743 = vpack.c.b16 %v433, %v423
    %v744 = vpack.c.b16 %v444, %v434
    %v745 = vpack.c.b16 %v445, %v435
    %v746 = vpack.c.b16 %v446, %v436
    %v747 = vpack.c.b16 %v447, %v437
    %v748 = vpack.c.b16 %v448, %v438
    %v749 = vpack.c.b16 %v449, %v439
    %v750 = vpack.c.b16 %v450, %v440
    %v751 = vpack.c.b16 %v451, %v441
    %v752 = vpack.c.b16 %v452, %v442
    %v753 = vpack.c.b16 %v453, %v443
    %v754 = vpack.c.b16 %v464, %v454
    %v755 = vpack.c.b16 %v465, %v455
    %v756 = vpack.c.b16 %v466, %v456
    %v757 = vpack.c.b16 %v467, %v457
    %v758 = vpack.c.b16 %v468, %v458
    %v759 = vpack.c.b16 %v469, %v459
    %v760 = vpack.c.b16 %v470, %v460
    %v761 = vpack.c.b16 %v471, %v461
    %v762 = vpack.c.b16 %v472, %v462
    %v763 = vpack.c.b16 %v473, %v463
    %v764 = vpack.c.b16 %v484, %v474
    %v765 = vpack.c.b16 %v485, %v475
    %v766 = vpack.c.b16 %v486, %v476
    %v767 = vpack.c.b16 %v487, %v477
    %v768 = vpack.c.b16 %v488, %v478
    %v769 = vpack.c.b16 %v489, %v479
    %v770 = vpack.c.b16 %v490, %v480
    %v771 = vpack.c.b16 %v491, %v481
    %v772 = vpack.c.b16 %v492, %v482
    %v773 = vpack.c.b16 %v493, %v483
    %v774 = vpack.c.b16 %v504, %v494
    %v775 = vpack.c.b16 %v505, %v495
    %v776 = vpack.c.b16 %v506, %v496
    %v777 = vpack.c.b16 %v507, %v497
    %v778 = vpack.c.b16 %v508, %v498
    %v779 = vpack.c.b16 %v509, %v499
    %v780 = vpack.c.b16 %v510, %v500
    %v781 = vpack.c.b16 %v511, %v501
    %v782 = vpack.c.b16 %v512, %v502
    %v783 = vpack.c.b16 %v513, %v503
    %v784 = vpack.c.b16 %v524, %v514
    %v785 = vpack.c.b16 %v525, %v515
    %v786 = vpack.c.b16 %v526, %v516
    %v787 = vpack.c.b16 %v527, %v517
    %v788 = vpack.c.b16 %v528, %v518
    %v789 = vpack.c.b16 %v529, %v519
    %v790 = vpack.c.b16 %v530, %v520
    %v791 = vpack.c.b16 %v531, %v521
    %v792 = vpack.c.b16 %v532, %v522
    %v793 = vpack.c.b16 %v533, %v523
    %v794 = vpack.c.b16 %v544, %v534
    %v795 = vpack.c.b16 %v545, %v535
    %v796 = vpack.c.b16 %v546, %v536
    %v797 = vpack.c.b16 %v547, %v537
    %v798 = vpack.c.b16 %v548, %v538
    %v799 = vpack.c.b16 %v549, %v539
    %v800 = vpack.c.b16 %v550, %v540
    %v801 = vpack.c.b16 %v551, %v541
    %v802 = vpack.c.b16 %v552, %v542
    %v803 = vpack.c.b16 %v553, %v543
    %v804 = vpack.c.b16 %v564, %v554
    %v805 = vpack.c.b16 %v565, %v555
    %v806 = vpack.c.b16 %v566, %v556
    %v807 = vpack.c.b16 %v567, %v557
    %v808 = vpack.c.b16 %v568, %v558
    %v809 = vpack.c.b16 %v569, %v559
    %v810 = vpack.c.b16 %v570, %v560
    %v811 = vpack.c.b16 %v571, %v561
    %v812 = vpack.c.b16 %v572, %v562
    %v813 = vpack.c.b16 %v573, %v563
    %v814 = vpack.c.b16 %v584, %v574
    %v815 = vpack.c.b16 %v585, %v575
    %v816 = vpack.c.b16 %v586, %v576
    %v817 = vpack.c.b16 %v587, %v577
    %v818 = vpack.c.b16 %v588, %v578
    %v819 = vpack.c.b16 %v589, %v579
    %v820 = vpack.c.b16 %v590, %v580
    %v821 = vpack.c.b16 %v591, %v581
    %v822 = vpack.c.b16 %v592, %v582
    %v823 = vpack.c.b16 %v593, %v583
    %v824 = vpack.c.b16 %v604, %v594
    %v825 = vpack.c.b16 %v605, %v595
    %v826 = vpack.c.b16 %v606, %v596
    %v827 = vpack.c.b16 %v607, %v597
    %v828 = vpack.c.b16 %v608, %v598
    %v829 = vpack.c.b16 %v609, %v599
    %v830 = vpack.c.b16 %v610, %v600
    %v831 = vpack.c.b16 %v611, %v601
    %v832 = vpack.c.b16 %v612, %v602
    %v833 = vpack.c.b16 %v613, %v603
    %v834 = vpack.c.b16 %v624, %v614
    %v835 = vpack.c.b16 %v625, %v615
    %v836 = vpack.c.b16 %v626, %v616
    %v837 = vpack.c.b16 %v627, %v617
    %v838 = vpack.c.b16 %v628, %v618
    %v839 = vpack.c.b16 %v629, %v619
    %v840 = vpack.c.b16 %v630, %v620
    %v841 = vpack.c.b16 %v631, %v621
    %v842 = vpack.c.b16 %v632, %v622
    %v843 = vpack.c.b16 %v633, %v623
    %v844 = vpack.c.b16 %v644, %v634
    %v845 = vpack.c.b16 %v645, %v635
    %v846 = vpack.c.b16 %v646, %v636
    %v847 = vpack.c.b16 %v647, %v637
    %v848 = vpack.c.b16 %v648, %v638
    %v849 = vpack.c.b16 %v649, %v639
    %v850 = vpack.c.b16 %v650, %v640
    %v851 = vpack.c.b16 %v651, %v641
    %v852 = vpack.c.b16 %v652, %v642
    %v853 = vpack.c.b16 %v653, %v643
    %v854 = vpack.c.b16 %v664, %v654
    %v855 = vpack.c.b16 %v665, %v655
    %v856 = vpack.c.b16 %v666, %v656
    %v857 = vpack.c.b16 %v667, %v657
    %v858 = vpack.c.b16 %v668, %v658
    %v859 = vpack.c.b16 %v669, %v659
    %v860 = vpack.c.b16 %v670, %v660
    %v861 = vpack.c.b16 %v671, %v661
    %v862 = vpack.c.b16 %v672, %v662
    %v863 = vpack.c.b16 %v673, %v663
    %v864 = vpack.c.b16 %v684, %v674
    %v865 = vpack.c.b16 %v685, %v675
    %v866 = vpack.c.b16 %v686, %v676
    %v867 = vpack.c.b16 %v687, %v677
    %v868 = vpack.c.b16 %v688, %v678
    %v869 = vpack.c.b16 %v689, %v679
    %v870 = vpack.c.b16 %v690, %v680
    %v871 = vpack.c.b16 %v691, %v681
    %v872 = vpack.c.b16 %v692, %v682
    %v873 = vpack.c.b16 %v693, %v683
    %v874 = vpack.c.b16 %v704, %v694
    %v875 = vpack.c.b16 %v705, %v695
    %v876 = vpack.c.b16 %v706, %v696
    %v877 = vpack.c.b16 %v707, %v697
    %v878 = vpack.c.b16 %v708, %v698
    %v879 = vpack.c.b16 %v709, %v699
    %v880 = vpack.c.b16 %v710, %v700
    %v881 = vpack.c.b16 %v711, %v701
    %v882 = vpack.c.b16 %v712, %v702
    %v883 = vpack.c.b16 %v713, %v703
    %v884 = vpack.c.b16 %v724, %v714
    %v885 = vpack.c.b16 %v725, %v715
    %v886 = vpack.c.b16 %v726, %v716
    %v887 = vpack.c.b16 %v727, %v717
    %v888 = vpack.c.b16 %v728, %v718
    %v889 = vpack.c.b16 %v729, %v719
    %v890 = vpack.c.b16 %v730, %v720
    %v891 = vpack.c.b16 %v731, %v721
    %v892 = vpack.c.b16 %v732, %v722
    %v893 = vpack.c.b16 %v733, %v723
    %1054 = vmatprep.subr.bf16.mxu0 %v735
    %1055 = vmatpush1.bf16.xpose.msra.mxu0 %v734
    %1056 = vmatprep.subr.bf16.mxu0 %v745
    %1057 = vmatpush1.bf16.xpose.msra.mxu0 %v744
    %1058 = vmatprep.subr.bf16.mxu0 %v755
    %1059 = vmatpush1.bf16.xpose.msra.mxu0 %v754
    %1060 = vmatprep.subr.bf16.mxu0 %v765
    %1061 = vmatpush1.bf16.xpose.msra.mxu0 %v764
    %1062 = vmatprep.subr.bf16.mxu0 %v775
    %1063 = vmatpush1.bf16.xpose.msra.mxu0 %v774
    %1064 = vmatprep.subr.bf16.mxu0 %v785
    %1065 = vmatpush1.bf16.xpose.msra.mxu0 %v784
    %1066 = vmatprep.subr.bf16.mxu0 %v795
    %1067 = vmatpush1.bf16.xpose.msra.mxu0 %v794
    %1068 = vmatprep.subr.bf16.mxu0 %v805
    %1069 = vmatpush1.bf16.xpose.msra.mxu0 %v804
    %1070 = vmatprep.subr.bf16.mxu0 %v815
    %1071 = vmatpush1.bf16.xpose.msra.mxu0 %v814
    %1072 = vmatprep.subr.bf16.mxu0 %v825
    %1073 = vmatpush1.bf16.xpose.msra.mxu0 %v824
    %1074 = vmatprep.subr.bf16.mxu0 %v835
    %1075 = vmatpush1.bf16.xpose.msra.mxu0 %v834
    %1076 = vmatprep.subr.bf16.mxu0 %v845
    %1077 = vmatpush1.bf16.xpose.msra.mxu0 %v844
    %1078 = vmatprep.subr.bf16.mxu0 %v855
    %1079 = vmatpush1.bf16.xpose.msra.mxu0 %v854
    %1080 = vmatprep.subr.bf16.mxu0 %v865
    %1081 = vmatpush1.bf16.xpose.msra.mxu0 %v864
    %1082 = vmatprep.subr.bf16.mxu0 %v875
    %1083 = vmatpush1.bf16.xpose.msra.mxu0 %v874
    %1084 = vmatprep.subr.bf16.mxu0 %v885
    %1085 = vmatpush1.bf16.xpose.msra.mxu0 %v884
    %1086 = vmatprep.mubr.bf16.mxu0 %v235
    %1087 = vmatmul.mubr.bf16.gmra.mrb[0].mxu0 %v234
    %v1088 = vpop.f32.mrb[0].mxu0
    %v1089 = vadd.f32 0.0, %v1088
    %v1090 = vpop.f32.mrb[0].mxu0
    %v1091 = vadd.f32 0.0, %v1090
    %v1092 = vpop.f32.mrb[0].mxu0
    %v1093 = vpop.f32.mrb[0].mxu0
    %1094 = vdwg.mxu0
    %1095 = vmatprep.subr.bf16.mxu0 %v737
    %1096 = vmatpush1.bf16.xpose.msra.mxu0 %v736
    %1097 = vmatprep.subr.bf16.mxu0 %v747
    %1098 = vmatpush1.bf16.xpose.msra.mxu0 %v746
    %1099 = vmatprep.subr.bf16.mxu0 %v757
    %1100 = vmatpush1.bf16.xpose.msra.mxu0 %v756
    %1101 = vmatprep.subr.bf16.mxu0 %v767
    %1102 = vmatpush1.bf16.xpose.msra.mxu0 %v766
    %1103 = vmatprep.subr.bf16.mxu0 %v777
    %1104 = vmatpush1.bf16.xpose.msra.mxu0 %v776
    %1105 = vmatprep.subr.bf16.mxu0 %v787
    %1106 = vmatpush1.bf16.xpose.msra.mxu0 %v786
    %1107 = vmatprep.subr.bf16.mxu0 %v797
    %1108 = vmatpush1.bf16.xpose.msra.mxu0 %v796
    %1109 = vmatprep.subr.bf16.mxu0 %v807
    %1110 = vmatpush1.bf16.xpose.msra.mxu0 %v806
    %1111 = vmatprep.subr.bf16.mxu0 %v817
    %1112 = vmatpush1.bf16.xpose.msra.mxu0 %v816
    %1113 = vmatprep.subr.bf16.mxu0 %v827
    %1114 = vmatpush1.bf16.xpose.msra.mxu0 %v826
    %1115 = vmatprep.subr.bf16.mxu0 %v837
    %1116 = vmatpush1.bf16.xpose.msra.mxu0 %v836
    %1117 = vmatprep.subr.bf16.mxu0 %v847
    %1118 = vmatpush1.bf16.xpose.msra.mxu0 %v846
    %1119 = vmatprep.subr.bf16.mxu0 %v857
    %1120 = vmatpush1.bf16.xpose.msra.mxu0 %v856
    %1121 = vmatprep.subr.bf16.mxu0 %v867
    %1122 = vmatpush1.bf16.xpose.msra.mxu0 %v866
    %1123 = vmatprep.subr.bf16.mxu0 %v877
    %1124 = vmatpush1.bf16.xpose.msra.mxu0 %v876
    %1125 = vmatprep.subr.bf16.mxu0 %v887
    %1126 = vmatpush1.bf16.xpose.msra.mxu0 %v886
    %1127 = vmatprep.mubr.bf16.mxu0 %v237
    %1128 = vmatmul.mubr.bf16.gmra.mrb[0].mxu0 %v236
    %v1129 = vpop.f32.mrb[0].mxu0
    %v1130 = vadd.f32 %v1089, %v1129
    %v1131 = vpop.f32.mrb[0].mxu0
    %v1132 = vadd.f32 %v1091, %v1131
    %v1133 = vpop.f32.mrb[0].mxu0
    %v1134 = vpop.f32.mrb[0].mxu0
    %1135 = vdwg.mxu0
    %1136 = vmatprep.subr.bf16.mxu0 %v739
    %1137 = vmatpush1.bf16.xpose.msra.mxu0 %v738
    %1138 = vmatprep.subr.bf16.mxu0 %v749
    %1139 = vmatpush1.bf16.xpose.msra.mxu0 %v748
    %1140 = vmatprep.subr.bf16.mxu0 %v759
    %1141 = vmatpush1.bf16.xpose.msra.mxu0 %v758
    %1142 = vmatprep.subr.bf16.mxu0 %v769
    %1143 = vmatpush1.bf16.xpose.msra.mxu0 %v768
    %1144 = vmatprep.subr.bf16.mxu0 %v779
    %1145 = vmatpush1.bf16.xpose.msra.mxu0 %v778
    %1146 = vmatprep.subr.bf16.mxu0 %v789
    %1147 = vmatpush1.bf16.xpose.msra.mxu0 %v788
    %1148 = vmatprep.subr.bf16.mxu0 %v799
    %1149 = vmatpush1.bf16.xpose.msra.mxu0 %v798
    %1150 = vmatprep.subr.bf16.mxu0 %v809
    %1151 = vmatpush1.bf16.xpose.msra.mxu0 %v808
    %1152 = vmatprep.subr.bf16.mxu0 %v819
    %1153 = vmatpush1.bf16.xpose.msra.mxu0 %v818
    %1154 = vmatprep.subr.bf16.mxu0 %v829
    %1155 = vmatpush1.bf16.xpose.msra.mxu0 %v828
    %1156 = vmatprep.subr.bf16.mxu0 %v839
    %1157 = vmatpush1.bf16.xpose.msra.mxu0 %v838
    %1158 = vmatprep.subr.bf16.mxu0 %v849
    %1159 = vmatpush1.bf16.xpose.msra.mxu0 %v848
    %1160 = vmatprep.subr.bf16.mxu0 %v859
    %1161 = vmatpush1.bf16.xpose.msra.mxu0 %v858
    %1162 = vmatprep.subr.bf16.mxu0 %v869
    %1163 = vmatpush1.bf16.xpose.msra.mxu0 %v868
    %1164 = vmatprep.subr.bf16.mxu0 %v879
    %1165 = vmatpush1.bf16.xpose.msra.mxu0 %v878
    %1166 = vmatprep.subr.bf16.mxu0 %v889
    %1167 = vmatpush1.bf16.xpose.msra.mxu0 %v888
    %1168 = vmatprep.mubr.bf16.mxu0 %v239
    %1169 = vmatmul.mubr.bf16.gmra.mrb[0].mxu0 %v238
    %v1170 = vpop.f32.mrb[0].mxu0
    %v1171 = vadd.f32 %v1130, %v1170
    %v1172 = vpop.f32.mrb[0].mxu0
    %v1173 = vadd.f32 %v1132, %v1172
    %v1174 = vpop.f32.mrb[0].mxu0
    %v1175 = vpop.f32.mrb[0].mxu0
    %1176 = vdwg.mxu0
    %1177 = vmatprep.subr.bf16.mxu0 %v741
    %1178 = vmatpush1.bf16.xpose.msra.mxu0 %v740
    %1179 = vmatprep.subr.bf16.mxu0 %v751
    %1180 = vmatpush1.bf16.xpose.msra.mxu0 %v750
    %1181 = vmatprep.subr.bf16.mxu0 %v761
    %1182 = vmatpush1.bf16.xpose.msra.mxu0 %v760
    %1183 = vmatprep.subr.bf16.mxu0 %v771
    %1184 = vmatpush1.bf16.xpose.msra.mxu0 %v770
    %1185 = vmatprep.subr.bf16.mxu0 %v781
    %1186 = vmatpush1.bf16.xpose.msra.mxu0 %v780
    %1187 = vmatprep.subr.bf16.mxu0 %v791
    %1188 = vmatpush1.bf16.xpose.msra.mxu0 %v790
    %1189 = vmatprep.subr.bf16.mxu0 %v801
    %1190 = vmatpush1.bf16.xpose.msra.mxu0 %v800
    %1191 = vmatprep.subr.bf16.mxu0 %v811
    %1192 = vmatpush1.bf16.xpose.msra.mxu0 %v810
    %1193 = vmatprep.subr.bf16.mxu0 %v821
    %1194 = vmatpush1.bf16.xpose.msra.mxu0 %v820
    %1195 = vmatprep.subr.bf16.mxu0 %v831
    %1196 = vmatpush1.bf16.xpose.msra.mxu0 %v830
    %1197 = vmatprep.subr.bf16.mxu0 %v841
    %1198 = vmatpush1.bf16.xpose.msra.mxu0 %v840
    %1199 = vmatprep.subr.bf16.mxu0 %v851
    %1200 = vmatpush1.bf16.xpose.msra.mxu0 %v850
    %1201 = vmatprep.subr.bf16.mxu0 %v861
    %1202 = vmatpush1.bf16.xpose.msra.mxu0 %v860
    %1203 = vmatprep.subr.bf16.mxu0 %v871
    %1204 = vmatpush1.bf16.xpose.msra.mxu0 %v870
    %1205 = vmatprep.subr.bf16.mxu0 %v881
    %1206 = vmatpush1.bf16.xpose.msra.mxu0 %v880
    %1207 = vmatprep.subr.bf16.mxu0 %v891
    %1208 = vmatpush1.bf16.xpose.msra.mxu0 %v890
    %1209 = vmatprep.mubr.bf16.mxu0 %v241
    %1210 = vmatmul.mubr.bf16.gmra.mrb[0].mxu0 %v240
    %v1211 = vpop.f32.mrb[0].mxu0
    %v1212 = vadd.f32 %v1171, %v1211
    %v1213 = vpop.f32.mrb[0].mxu0
    %v1214 = vadd.f32 %v1173, %v1213
    %v1215 = vpop.f32.mrb[0].mxu0
    %v1216 = vpop.f32.mrb[0].mxu0
    %1217 = vdwg.mxu0
    %1218 = vmatprep.subr.bf16.mxu0 %v743
    %1219 = vmatpush1.bf16.xpose.msra.mxu0 %v742
    %1220 = vmatprep.subr.bf16.mxu0 %v753
    %1221 = vmatpush1.bf16.xpose.msra.mxu0 %v752
    %1222 = vmatprep.subr.bf16.mxu0 %v763
    %1223 = vmatpush1.bf16.xpose.msra.mxu0 %v762
    %1224 = vmatprep.subr.bf16.mxu0 %v773
    %1225 = vmatpush1.bf16.xpose.msra.mxu0 %v772
    %1226 = vmatprep.subr.bf16.mxu0 %v783
    %1227 = vmatpush1.bf16.xpose.msra.mxu0 %v782
    %1228 = vmatprep.subr.bf16.mxu0 %v793
    %1229 = vmatpush1.bf16.xpose.msra.mxu0 %v792
    %1230 = vmatprep.subr.bf16.mxu0 %v803
    %1231 = vmatpush1.bf16.xpose.msra.mxu0 %v802
    %1232 = vmatprep.subr.bf16.mxu0 %v813
    %1233 = vmatpush1.bf16.xpose.msra.mxu0 %v812
    %1234 = vmatprep.subr.bf16.mxu0 %v823
    %1235 = vmatpush1.bf16.xpose.msra.mxu0 %v822
    %1236 = vmatprep.subr.bf16.mxu0 %v833
    %1237 = vmatpush1.bf16.xpose.msra.mxu0 %v832
    %1238 = vmatprep.subr.bf16.mxu0 %v843
    %1239 = vmatpush1.bf16.xpose.msra.mxu0 %v842
    %1240 = vmatprep.subr.bf16.mxu0 %v853
    %1241 = vmatpush1.bf16.xpose.msra.mxu0 %v852
    %1242 = vmatprep.subr.bf16.mxu0 %v863
    %1243 = vmatpush1.bf16.xpose.msra.mxu0 %v862
    %1244 = vmatprep.subr.bf16.mxu0 %v873
    %1245 = vmatpush1.bf16.xpose.msra.mxu0 %v872
    %1246 = vmatprep.subr.bf16.mxu0 %v883
    %1247 = vmatpush1.bf16.xpose.msra.mxu0 %v882
    %1248 = vmatprep.subr.bf16.mxu0 %v893
    %1249 = vmatpush1.bf16.xpose.msra.mxu0 %v892
    %1250 = vmatprep.mubr.bf16.mxu0 %v243
    %1251 = vmatmul.mubr.bf16.gmra.mrb[0].mxu0 %v242
    %v1252 = vpop.f32.mrb[0].mxu0
    %v1253 = vadd.f32 %v1212, %v1252
    %v1254 = vpop.f32.mrb[0].mxu0
    %v1255 = vadd.f32 %v1214, %v1254
    %v1256 = vpop.f32.mrb[0].mxu0
    %v1257 = vpop.f32.mrb[0].mxu0
    %1258 = vdwg.mxu0
    %v1259 = vadd.f32 %v57, %v1253
    %v1260 = vadd.f32 %v58, %v1255
    %1261 = vst [vmem:[#allocation2] sm:$0xff] %v1259
    %1262 = vst [vmem:[#allocation2 + $0x8] sm:$0xff] %v1260
    // Predicated region
    $region26: #{tpu_custom_call.1} parent=1 // pred_check
      %p1263 = pneg %p41
    $region27: #{tpu_custom_call.1} parent=1 // pred_check_branch
      %1265 = sbr.rel (%p1263) target = $region29
    $region28: #{tpu_custom_call.1} parent=1 // pred_region
      %v1266 = vld [vmem:[#allocation2] sm:$0xff]
      %v1267 = vld [vmem:[#allocation2 + $0x8] sm:$0xff]
      %v1268 = vld [vmem:[%s2] sm:$0x3]
      %v1270 = vlaneseq
      %v1271 = vshrl.u32 %v1270, 7
      %v1272 = vsub.s32 0, %v1271
      %v1273 = vrot.slane %v1268, %v1272
      %v1274 = vlaneseq
      %v1275 = vshrl.u32 %v1274, 7
      %v1276 = vsub.s32 1, %v1275
      %v1277 = vrot.slane %v1268, %v1276
      %v1280 = vadd.f32 %v1266, %v1273
      %v1281 = vadd.f32 %v1267, %v1277
      %v1282 = vtanh.pop %v1280
      %v1283 = vtanh.pop %v1281
      %1284 = vst [vmem:[#allocation8] sm:$0xff] %v1282
      %1285 = vst [vmem:[#allocation8 + $0x8] sm:$0xff] %v1283
    $region29: #{tpu_custom_call.1} parent=1 // pred_fallthru
      _
    // Predicated region
    $region30: #{tpu_custom_call.1} parent=1 // pred_check
      _
    $region31: #{tpu_custom_call.1} parent=1 // pred_check_branch
      %1287 = sbr.rel (0) target = $region33
    $region32: #{tpu_custom_call.1} parent=1 // pred_region
      %s1289 = ssub.s32 256, 256
      %1290 = vsyncadd [#allocation5], %s1289
      %s1292 = sshll.u32 [#allocation8], 4
      %s1293 = int_to_ptr.vmem [resolvable:$true] %s1292
      %1295 = dma.vmem_to_hbm [thread:$0]  %s1293, 256, %s3, [#allocation5]
    $region33: #{tpu_custom_call.1} parent=1 // pred_fallthru
      _
    // Predicated region
    $region34: #{tpu_custom_call.1} parent=1 // pred_check
      _
    $region35: #{tpu_custom_call.1} parent=1 // pred_check_branch
      %1297 = sbr.rel (0) target = $region37
    $region36: #{tpu_custom_call.1} parent=1 // pred_region
      %1298 = dma.done [#allocation5], 256
    $region37: #{tpu_custom_call.1} parent=1 // pred_fallthru
      _
    %1299 = vsyncpa [#allocation4], 1
    %1300 = vsyncpa [#allocation7], 1
    %1301 = vsyncpa [#allocation5], 1

</llo_original>
